<compile_context>
chip_gen: v7x
topology: tpu7x:2x2x1
jax: 0.10.0
libtpu: 0.0.40
codegen_flags: <defaults>
</compile_context>

<pallas_src>
from functools import partial

import jax
import jax.numpy as jnp
from jax.experimental import pallas as pl
from jax.experimental.pallas import tpu as pltpu

CFG_ADJUST = True   # stands in for cfg.ADJUST.ADJUST
CFG_MASK = False    # stands in for cfg.MASK.MASK

_LANES = 128
_SUBLANES = 8


# -----------------------------------------------------------------------------
# perturb:  x = clip(img + eps * (2 * (adv - min) / (max - min) - 1), 0, 255)
# -----------------------------------------------------------------------------
@jax.jit
def _perturb_impl(adv, img, eps):
    """Batch-invariant adv normalization is computed ONCE in the wrapper (it is a
    trivial reduction over the ~190 KB parameter); the Pallas kernel is the
    per-batch lane-dense add + clip with a fully 'parallel' batch grid."""
    B = img.shape[0]
    n = adv.size
    eps = jnp.asarray(eps, jnp.float32)
    adv_f = adv.reshape(-1).astype(jnp.float32)
    amin, amax = jnp.min(adv_f), jnp.max(adv_f)
    # Matches the reference exactly: divide by (max - min) directly (no guard).
    delta = eps * (2.0 * (adv_f - amin) / (amax - amin) - 1.0)

    # Pad to an (8,128)-aligned slab so the elementwise path runs at full vreg
    # width (previous (3, H*W) layout used 3 of 8 sublanes per vreg).
    blk = _LANES * _SUBLANES
    npad = ((n + blk - 1) // blk) * blk
    rows = npad // _LANES
    delta_p = jnp.pad(delta, (0, npad - n)).reshape(rows, _LANES)
    img_p = jnp.pad(img.astype(jnp.float32).reshape(B, n),
                    ((0, 0), (0, npad - n))).reshape(B, rows, _LANES)

    def kernel(d_ref, i_ref, o_ref):
        o_ref[...] = jnp.clip(i_ref[0] + d_ref[...], 0.0, 255.0)[None]

    out = pl.pallas_call(
        kernel,
        out_shape=jax.ShapeDtypeStruct((B, rows, _LANES), jnp.float32),
        grid=(B,),
        in_specs=[
            pl.BlockSpec((rows, _LANES), lambda b: (0, 0)),        # delta (bcast)
            pl.BlockSpec((1, rows, _LANES), lambda b: (b, 0, 0)),
        ],
        out_specs=pl.BlockSpec((1, rows, _LANES), lambda b: (b, 0, 0)),
        compiler_params=pltpu.CompilerParams(dimension_semantics=("parallel",)),
    )(delta_p, img_p)
    return out.reshape(B, npad)[:, :n].reshape(img.shape)


def perturb_pallas(adv, img, epsilon):
    return _perturb_impl(adv, img, jnp.float32(epsilon))


# -----------------------------------------------------------------------------
# Feature path: backbone + neck collapsed into ONE level-stacked 1x1-conv matmul
# -----------------------------------------------------------------------------
def _feature_tile_n(n):
    """Grid shaping for the tiny K=3 feature matmul: one grid step on 1-TC
    v5e/v6e (per-step overhead ~0.35us dominates the latency-bound matmul), a
    2-way 'parallel' split on 2-TC v7x so both TensorCores are used."""
    try:
        kind = jax.devices()[0].device_kind.lower()
        multi_tc = ("v7" in kind) or ("7x" in kind)
    except Exception:  # defensive: default to a single step
        multi_tc = False
    if multi_tc and n % 256 == 0:
        return n // 2
    return n


def stacked_conv1x1(w, x2d):
    """Level-stacked 1x1 conv as a single MXU matmul: w (M,K) @ x2d (K,N), with
    batch folded into the lane-dense N dimension."""
    M, K = w.shape
    N = x2d.shape[1]
    tn = _feature_tile_n(N)
    grid_n = N // tn

    def kernel(w_ref, x_ref, o_ref):
        o_ref[...] = jnp.dot(w_ref[...], x_ref[...],
                             preferred_element_type=jnp.float32)

    return pl.pallas_call(
        kernel,
        out_shape=jax.ShapeDtypeStruct((M, N), jnp.float32),
        grid=(grid_n,),
        in_specs=[
            pl.BlockSpec((M, K), lambda j: (0, 0)),
            pl.BlockSpec((K, tn), lambda j: (0, j)),
        ],
        out_specs=pl.BlockSpec((M, tn), lambda j: (0, j)),
        compiler_params=pltpu.CompilerParams(dimension_semantics=("parallel",)),
    )(w, x2d)


@partial(jax.jit, static_argnames=("batch", "hs", "ws", "num_levels"))
def _fused_1x1_levels(w_stacked, x2d, *, batch, hs, ws, num_levels):
    """One Pallas matmul producing all feature levels, reshaped to per-level NCHW."""
    f2d = stacked_conv1x1(w_stacked, x2d)                     # (L*d, B*Hs*Ws)
    d = f2d.shape[0] // num_levels
    f = f2d.reshape(num_levels, d, batch, hs, ws)
    return jnp.transpose(f, (0, 2, 1, 3, 4))                  # (L, B, d, Hs, Ws)


# -----------------------------------------------------------------------------
# Fused RPN head: xcorr + level average + cls/loc head as ONE MXU matmul
# -----------------------------------------------------------------------------
@jax.jit
def _build_wprime(z_stk, head_w):
    """Fold template features + level average + cls/loc head into one weight:
    W'[h, (l,c,k)] = head_w[h,c] * z[l,c,k] / L   (bf16, MXU-native input)."""
    L = z_stk.shape[0]
    w = head_w[:, None, :, None].astype(jnp.float32) * z_stk[None] * (1.0 / L)
    return w.reshape(head_w.shape[0], -1).astype(jnp.bfloat16)   # (Hc, L*d*Kz)


@partial(jax.jit, static_argnames=("hz", "wz"))
def _build_xcol(xf_st, *, hz, wz):
    """im2col of the search features in the same (l, c, k) flat ordering as W',
    padded lane-dense to a multiple of 128 lanes; bf16 halves the HBM->VMEM DMA.
    # TODO(synk): at real pysot sizes the Kz windows should be generated
    # in-kernel from the raw (d, Hx*Wx) feature tile (with a K-reduction grid
    # axis + vmem_limit_bytes) instead of materializing im2col in HBM.
    """
    L, B, d, Hx, Wx = xf_st.shape
    ho, wo = Hx - hz + 1, Wx - wz + 1
    oo = ho * wo
    p = ((oo + _LANES - 1) // _LANES) * _LANES
    cols = [xf_st[:, :, :, u:u + ho, v:v + wo].reshape(L, B, d, 1, oo)
            for u in range(hz) for v in range(wz)]
    xcol = jnp.concatenate(cols, axis=3)                          # (L, B, d, Kz, oo)
    xcol = jnp.transpose(xcol, (1, 0, 2, 3, 4)).reshape(B, L * d * hz * wz, oo)
    xcol = jnp.pad(xcol, ((0, 0), (0, 0), (0, p - oo)))
    return xcol.astype(jnp.bfloat16)                              # (B, L*d*Kz, P)


@jax.jit
def _head_matmul(wprime, xcol):
    """Fused RPN head: per batch element ONE MXU matmul
        out[b] = W' (Hc, K) @ xcol[b] (K, P),  bf16 inputs, f32 accumulation.
    W' is batch-invariant, so the template broadcast over the search batch is
    free (no broadcast_to_batch copies); grid=(B,) 'parallel' keeps both v7x
    TensorCores busy."""
    B, K, P = xcol.shape
    Hc = wprime.shape[0]

    def kernel(w_ref, x_ref, o_ref):
        o_ref[...] = jnp.dot(w_ref[...], x_ref[0],
                             preferred_element_type=jnp.float32)[None]

    return pl.pallas_call(
        kernel,
        out_shape=jax.ShapeDtypeStruct((B, Hc, P), jnp.float32),
        grid=(B,),
        in_specs=[
            pl.BlockSpec((Hc, K), lambda b: (0, 0)),           # W' (bcast over batch)
            pl.BlockSpec((1, K, P), lambda b: (b, 0, 0)),      # im2col, lane-dense
        ],
        out_specs=pl.BlockSpec((1, Hc, P), lambda b: (b, 0, 0)),
        compiler_params=pltpu.CompilerParams(dimension_semantics=("parallel",)),
    )(wprime, xcol)


# -----------------------------------------------------------------------------
# Synthetic tracker (stand-in for the external pysot model_builder)
# -----------------------------------------------------------------------------
class _PreFeat:
    """Backbone stem output: stride-subsampled activation flattened to a
    lane-dense (Cin, B*Hs*Ws) matrix.  The backbone's 1x1 channel mixing is
    deferred so it fuses with the neck's 1x1 conv into one Pallas matmul."""

    def __init__(self, x2d, batch, hs, ws):
        self.x2d, self.batch, self.hs, self.ws = x2d, batch, hs, ws


class _Feats:
    """Materialized per-level NCHW features plus lazily built, cached tensors
    reused across forward()/track() calls (perf review):
      _wprime : folded (head x template / L) weights  (template side)
      _xcol   : lane-dense bf16 im2col of the search features (search side)."""

    def __init__(self, levels):
        self.levels = list(levels)
        self._wprime = None
        self._xcol = None
        self._xcol_key = None

    def __getitem__(self, i):
        return self.levels[i]

    def __len__(self):
        return len(self.levels)

    def __iter__(self):
        return iter(self.levels)


class SimpleTracker:
    # TODO(synk): pysot's real ResNet backbone / AdjustLayer neck / MultiRPN head
    # are external modules not defined in ModelAttacker; deterministic synthetic
    # Pallas stand-ins with matching call signatures are used instead.
    def __init__(self, key, cin=3, d=16, num_anchors=5, stride=16, num_levels=3):
        ks = jax.random.split(key, 8)
        self.stride = stride
        self.d = d
        self.num_levels = num_levels
        self.num_anchors = num_anchors
        self.backbone_w = [
            0.05 * jax.random.normal(ks[i], (d, cin), jnp.float32)
            for i in range(num_levels)
        ]
        self.neck_w = [
            0.10 * jax.random.normal(ks[num_levels + i], (d, d), jnp.float32)
            for i in range(num_levels)
        ]
        self.cls_w = 0.10 * jax.random.normal(ks[6], (2 * num_anchors, d), jnp.float32)
        self.loc_w = 0.10 * jax.random.normal(ks[7], (4 * num_anchors, d), jnp.float32)
        # Pre-fused weights:
        #   * neck @ backbone pre-multiplied per level, levels stacked on rows,
        #   * cls and loc heads stacked so the fused head needs one weight.
        self.bb_w = jnp.concatenate(self.backbone_w, axis=0)                # (L*d, Cin)
        self.bbneck_w = jnp.concatenate(
            [wn @ wb for wn, wb in zip(self.neck_w, self.backbone_w)], axis=0)
        self.head_w = jnp.concatenate([self.cls_w, self.loc_w], axis=0)     # (6A, d)

    # -- backbone stem: subsample + flatten to lane-dense 2-D -------------------
    def backbone(self, img):
        # TODO(synk): the ::stride subsample + transpose are thin XLA glue; they
        # could be folded into the Pallas load with a strided index_map.
        xs = img[:, :, ::self.stride, ::self.stride]
        B, C, Hs, Ws = xs.shape
        x2d = jnp.transpose(xs, (1, 0, 2, 3)).reshape(C, B * Hs * Ws)
        return _PreFeat(x2d, B, Hs, Ws)

    def _materialize(self, pf, w_stacked):
        f = _fused_1x1_levels(w_stacked, pf.x2d, batch=pf.batch, hs=pf.hs,
                              ws=pf.ws, num_levels=self.num_levels)
        return [f[i] for i in range(self.num_levels)]

    # -- neck (AdjustLayer), fused with the backbone 1x1 conv -------------------
    def neck(self, fs):
        if isinstance(fs, _PreFeat):
            return _Feats(self._materialize(fs, self.bbneck_w))
        # Already-materialized features (unused with cfg.ADJUST.ADJUST = True).
        return _Feats([jnp.einsum('oc,bchw->bohw', w, f)
                       for w, f in zip(self.neck_w, fs)])

    # -- cached builders for the fused head --------------------------------------
    def _cached_wprime(self, zfs, hz, wz):
        if isinstance(zfs, _Feats) and zfs._wprime is not None:
            return zfs._wprime
        z_stk = jnp.stack([zf[0].reshape(self.d, hz * wz) for zf in zfs], axis=0)
        wprime = _build_wprime(z_stk, self.head_w)
        if isinstance(zfs, _Feats):
            zfs._wprime = wprime
        return wprime

    def _cached_xcol(self, xfs, hz, wz):
        if (isinstance(xfs, _Feats) and xfs._xcol is not None
                and xfs._xcol_key == (hz, wz)):
            return xfs._xcol
        xf_st = jnp.stack(list(xfs), axis=0)                  # (L, B, d, Hx, Wx)
        xcol = _build_xcol(xf_st, hz=hz, wz=wz)
        if isinstance(xfs, _Feats):
            xfs._xcol, xfs._xcol_key = xcol, (hz, wz)
        return xcol

    # -- fused RPN head -----------------------------------------------------------
    def rpn_head(self, zfs, xfs):
        if isinstance(zfs, _PreFeat):      # cfg.ADJUST.ADJUST == False fallback
            zfs = _Feats(self._materialize(zfs, self.bb_w))
        if isinstance(xfs, _PreFeat):
            xfs = _Feats(self._materialize(xfs, self.bb_w))
        hz, wz = zfs[0].shape[-2], zfs[0].shape[-1]
        B, _, hx, wx = xfs[0].shape
        ho, wo = hx - hz + 1, wx - wz + 1
        wprime = self._cached_wprime(zfs, hz, wz)     # cached across track() calls
        xcol = self._cached_xcol(xfs, hz, wz)         # cached when self.xf is reused
        out = _head_matmul(wprime, xcol)[:, :, :ho * wo]
        n_cls = 2 * self.num_anchors
        cls = out[:, :n_cls].reshape(B, n_cls, ho, wo)
        loc = out[:, n_cls:].reshape(B, 4 * self.num_anchors, ho, wo)
        return cls, loc


# -----------------------------------------------------------------------------
# ModelAttacker
# -----------------------------------------------------------------------------
class ModelAttacker:
    def __init__(self, key):
        # nn.Parameter(torch.rand([1, 3, 127, 127])) -> uniform [0, 1)
        self.adv = jax.random.uniform(key, (1, 3, 127, 127), jnp.float32)
        self.zf = None
        self.xf = None

    def perturb(self, img, epsilon):
        return perturb_pallas(self.adv, img, epsilon)

    def template(self, z, tracker, epsilon=0):
        if epsilon != 0:
            z = self.perturb(z, epsilon)
            # (the reference prints torch.sum(_z - z) here; dead compute omitted)
        zf = tracker.backbone(z)
        if CFG_ADJUST:
            zf = tracker.neck(zf)
        self.zf = zf
        return z

    def forward(self, x, tracker, iter=0):
        xf = tracker.backbone(x)
        if CFG_MASK:
            self.xf = xf[:-1]
            xf = xf[-1]
        if CFG_ADJUST:
            xf = tracker.neck(xf)
        self.xf = xf
        # The reference broadcasts self.zf to the search batch here; in the fused
        # head the folded W' is batch-invariant, so the broadcast is free (no
        # broadcast_to_batch copies, no repeat/permute).
        cls, loc = tracker.rpn_head(self.zf, self.xf)
        return {'cls': cls, 'loc': loc}

    def track(self, x, tracker, iter=0):
        if iter == 0:
            xf = tracker.backbone(x)
            if CFG_MASK:
                self.xf = xf[:-1]
                xf = xf[-1]
            if CFG_ADJUST:
                xf = tracker.neck(xf)
            self.xf = xf
        cls, loc = tracker.rpn_head(self.zf, self.xf)
        return {'cls': cls, 'loc': loc}


# -----------------------------------------------------------------------------
# Pure-JAX reference (for the numerical self-check only)
# -----------------------------------------------------------------------------
@partial(jax.jit, static_argnames=("stride",))
def _reference_pipeline(adv, z_img, x_img, bb_ws, nk_ws, cls_w, loc_w, eps, *, stride):
    hp = jax.lax.Precision.HIGHEST
    xn = (adv - adv.min()) / (adv.max() - adv.min())
    z_adv = jnp.clip(z_img + eps * (2.0 * xn - 1.0), 0.0, 255.0)

    def feats(img):
        xs = img[:, :, ::stride, ::stride]
        out = []
        for wb, wn in zip(bb_ws, nk_ws):
            f = jnp.einsum('oc,bchw->bohw', wb, xs, precision=hp)
            f = jnp.einsum('oc,bchw->bohw', wn, f, precision=hp)
            out.append(f)
        return out

    zf, xf = feats(z_adv), feats(x_img)
    _, d, Hz, Wz = zf[0].shape
    B, _, Hx, Wx = xf[0].shape
    Ho, Wo = Hx - Hz + 1, Wx - Wz + 1
    feat = jnp.zeros((B, d, Ho, Wo), jnp.float32)
    for lvl in range(len(zf)):
        for u in range(Hz):
            for v in range(Wz):
                feat = feat + (xf[lvl][:, :, u:u + Ho, v:v + Wo]
                               * zf[lvl][:, :, u:u + 1, v:v + 1])
    feat = feat / len(zf)
    cls = jnp.einsum('oc,bchw->bohw', cls_w, feat, precision=hp)
    loc = jnp.einsum('oc,bchw->bohw', loc_w, feat, precision=hp)
    return z_adv, cls, loc


# -----------------------------------------------------------------------------
if __name__ == "__main__":
    key = jax.random.PRNGKey(0)
    kadv, kz, kx, kt = jax.random.split(key, 4)

    attacker = ModelAttacker(kadv)
    tracker = SimpleTracker(kt)

    # Template (exemplar) image and search image, in [0, 255] like real frames.
    z = jax.random.uniform(kz, (1, 3, 127, 127), jnp.float32) * 255.0
    x = jax.random.uniform(kx, (2, 3, 255, 255), jnp.float32) * 255.0

    z_adv = attacker.template(z, tracker, epsilon=8.0)   # perturb + zf features
    out = attacker.forward(x, tracker)                   # cls / loc heads
    out_trk = attacker.track(x, tracker, iter=1)         # reuses cached self.xf / W' / xcol

    jax.block_until_ready((z_adv, out['cls'], out['loc'],
                           out_trk['cls'], out_trk['loc']))

    assert z_adv.shape == (1, 3, 127, 127)
    assert out['cls'].shape == (2, 10, 9, 9)
    assert out['loc'].shape == (2, 20, 9, 9)
    assert out_trk['cls'].shape == (2, 10, 9, 9)
    assert bool(jnp.all(z_adv >= 0.0)) and bool(jnp.all(z_adv <= 255.0))

    # Numerical self-check against a plain-JAX reference of the same pipeline.
    z_ref, cls_ref, loc_ref = _reference_pipeline(
        attacker.adv, z, x, tracker.backbone_w, tracker.neck_w,
        tracker.cls_w, tracker.loc_w, 8.0, stride=tracker.stride)
    assert float(jnp.max(jnp.abs(z_adv - z_ref))) < 1e-3

    def _close(a, b, rtol=5e-2):
        return float(jnp.max(jnp.abs(a - b))) <= rtol * float(jnp.max(jnp.abs(b))) + 1e-2

    assert _close(out['cls'], cls_ref)
    assert _close(out['loc'], loc_ref)
    assert _close(out_trk['cls'], cls_ref)

    print("KERNEL_OK")
</pallas_src>

<mosaic_0001>
module attributes {stable_mosaic.version = 11 : i64} {
  func.func @kernel(%arg0: i32, %arg1: memref<384x128xf32, #tpu.memory_space<vmem>>, %arg2: memref<1x384x128xf32, #tpu.memory_space<vmem>>, %arg3: memref<1x384x128xf32, #tpu.memory_space<vmem>>) attributes {dimension_semantics = [#tpu.dimension_semantics<parallel>], iteration_bounds = array<i64: 1>, scalar_prefetch = 0 : i64, scratch_operands = 0 : i64, tpu.core_type = #tpu.core_type<tc>, window_params = [{pipeline_mode = #tpu.pipeline_mode<synchronous>, transform_indices = @transform_0, window_bounds = array<i64: 384, 128>}, {transform_indices = @transform_1, window_bounds = array<i64: 1, 384, 128>}, {transform_indices = @transform_2, window_bounds = array<i64: 1, 384, 128>}]} {
    %c0 = arith.constant 0 : index
    %c0_0 = arith.constant 0 : index
    %c0_1 = arith.constant 0 : index
    %0 = vector.load %arg2[%c0, %c0_0, %c0_1] : memref<1x384x128xf32, #tpu.memory_space<vmem>>, vector<1x384x128xf32>
    %1 = vector.shape_cast %0 : vector<1x384x128xf32> to vector<384x128xf32>
    %c0_2 = arith.constant 0 : index
    %c0_3 = arith.constant 0 : index
    %2 = vector.load %arg1[%c0_2, %c0_3] : memref<384x128xf32, #tpu.memory_space<vmem>>, vector<384x128xf32>
    %3 = arith.addf %1, %2 : vector<384x128xf32>
    %cst = arith.constant 0.000000e+00 : f32
    %cst_4 = arith.constant 2.550000e+02 : f32
    %4 = vector.broadcast %cst : f32 to vector<384x128xf32>
    %5 = arith.maximumf %4, %3 : vector<384x128xf32>
    %6 = vector.broadcast %cst_4 : f32 to vector<384x128xf32>
    %7 = arith.minimumf %6, %5 : vector<384x128xf32>
    %8 = vector.shape_cast %7 : vector<384x128xf32> to vector<1x384x128xf32>
    %c0_5 = arith.constant 0 : index
    %c0_6 = arith.constant 0 : index
    %c0_7 = arith.constant 0 : index
    %9 = vector.load %arg3[%c0_5, %c0_6, %c0_7] : memref<1x384x128xf32, #tpu.memory_space<vmem>>, vector<1x384x128xf32>
    tpu.vector_store %arg3[%c0_5, %c0_6, %c0_7], %8 {strides = array<i32>} : memref<1x384x128xf32, #tpu.memory_space<vmem>>, vector<1x384x128xf32>,
    return
  }
  func.func @transform_0(%arg0: i32) -> (i32, i32) {
    %c0_i32 = arith.constant 0 : i32
    %c0_i32_0 = arith.constant 0 : i32
    %c0_i32_1 = arith.constant 0 : i32
    return %c0_i32, %c0_i32_0 : i32, i32
  }
  func.func @transform_1(%arg0: i32) -> (i32, i32, i32) {
    %c0_i32 = arith.constant 0 : i32
    %c0_i32_0 = arith.constant 0 : i32
    %c0_i32_1 = arith.constant 0 : i32
    return %arg0, %c0_i32, %c0_i32_0 : i32, i32, i32
  }
  func.func @transform_2(%arg0: i32) -> (i32, i32, i32) {
    %c0_i32 = arith.constant 0 : i32
    %c0_i32_0 = arith.constant 0 : i32
    %c0_i32_1 = arith.constant 0 : i32
    return %arg0, %c0_i32, %c0_i32_0 : i32, i32, i32
  }
}

</mosaic_0001>

<llo_original>
// kernel: _perturb_impl.1
$region0: #{_perturb_impl.1}
  #allocation0 [shape = 'u32[]', space=smem, size = 0x4, offset = 0x4, fixed_abs, tag = 'smem constant byte address 0x4 - core index']
  #allocation1 [shape = 'u32[144,128]{1,0:T(1,128)}', space=vmem, size = 0x12000, scoped, tag = 'internal scratch']
  %s0 = inlined_call_operand.vmem [shape: f32[384,128], index: 0, kind: input, shape index: {}]
  %s1 = inlined_call_operand.vmem [shape: f32[1,384,128], index: 1, kind: input, shape index: {}]
  %s2 = inlined_call_operand.vmem [shape: f32[1,384,128], index: 2, kind: output, shape index: {}]
  %s3 = sld [smem:[#allocation0]]
  $region18: #{_perturb_impl.1} parent=0
    _
  %s5 = ssub.s32 1, %s3
  %s6 = scalar_select 0, %s5, %s3
  // Predicated region
  $region2: #{_perturb_impl.1} parent=0 // pred_check
    _
  $region3: #{_perturb_impl.1} parent=0 // pred_check_branch
    %8 = sbr.rel (0) target = $region5
  $region4: #{_perturb_impl.1} parent=0 // pred_region
    _
  $region5: #{_perturb_impl.1} parent=0 // pred_fallthru
    _
  // Predicated region
  $region6: #{_perturb_impl.1} parent=0 // pred_check
    _
  $region7: #{_perturb_impl.1} parent=0 // pred_check_branch
    %10 = sbr.rel (0) target = $region9
  $region8: #{_perturb_impl.1} parent=0 // pred_region
    _
  $region9: #{_perturb_impl.1} parent=0 // pred_fallthru
    _
  %v11 = vld [vmem:[%s1] sm:$0xff]
  %v12 = vld [vmem:[%s1 + $0x8] sm:$0xff]
  %v13 = vld [vmem:[%s1 + $0x10] sm:$0xff]
  %v14 = vld [vmem:[%s1 + $0x18] sm:$0xff]
  %v15 = vld [vmem:[%s1 + $0x20] sm:$0xff]
  %v16 = vld [vmem:[%s1 + $0x28] sm:$0xff]
  %v17 = vld [vmem:[%s1 + $0x30] sm:$0xff]
  %v18 = vld [vmem:[%s1 + $0x38] sm:$0xff]
  %v19 = vld [vmem:[%s1 + $0x40] sm:$0xff]
  %v20 = vld [vmem:[%s1 + $0x48] sm:$0xff]
  %v21 = vld [vmem:[%s1 + $0x50] sm:$0xff]
  %v22 = vld [vmem:[%s1 + $0x58] sm:$0xff]
  %v23 = vld [vmem:[%s1 + $0x60] sm:$0xff]
  %v24 = vld [vmem:[%s1 + $0x68] sm:$0xff]
  %v25 = vld [vmem:[%s1 + $0x70] sm:$0xff]
  %v26 = vld [vmem:[%s1 + $0x78] sm:$0xff]
  %v27 = vld [vmem:[%s1 + $0x80] sm:$0xff]
  %v28 = vld [vmem:[%s1 + $0x88] sm:$0xff]
  %v29 = vld [vmem:[%s1 + $0x90] sm:$0xff]
  %v30 = vld [vmem:[%s1 + $0x98] sm:$0xff]
  %v31 = vld [vmem:[%s1 + $0xa0] sm:$0xff]
  %v32 = vld [vmem:[%s1 + $0xa8] sm:$0xff]
  %v33 = vld [vmem:[%s1 + $0xb0] sm:$0xff]
  %v34 = vld [vmem:[%s1 + $0xb8] sm:$0xff]
  %v35 = vld [vmem:[%s1 + $0xc0] sm:$0xff]
  %v36 = vld [vmem:[%s1 + $0xc8] sm:$0xff]
  %v37 = vld [vmem:[%s1 + $0xd0] sm:$0xff]
  %v38 = vld [vmem:[%s1 + $0xd8] sm:$0xff]
  %v39 = vld [vmem:[%s1 + $0xe0] sm:$0xff]
  %v40 = vld [vmem:[%s1 + $0xe8] sm:$0xff]
  %v41 = vld [vmem:[%s1 + $0xf0] sm:$0xff]
  %v42 = vld [vmem:[%s1 + $0xf8] sm:$0xff]
  %v43 = vld [vmem:[%s1 + $0x100] sm:$0xff]
  %v44 = vld [vmem:[%s1 + $0x108] sm:$0xff]
  %v45 = vld [vmem:[%s1 + $0x110] sm:$0xff]
  %v46 = vld [vmem:[%s1 + $0x118] sm:$0xff]
  %v47 = vld [vmem:[%s1 + $0x120] sm:$0xff]
  %v48 = vld [vmem:[%s1 + $0x128] sm:$0xff]
  %v49 = vld [vmem:[%s1 + $0x130] sm:$0xff]
  %v50 = vld [vmem:[%s1 + $0x138] sm:$0xff]
  %v51 = vld [vmem:[%s1 + $0x140] sm:$0xff]
  %v52 = vld [vmem:[%s1 + $0x148] sm:$0xff]
  %v53 = vld [vmem:[%s1 + $0x150] sm:$0xff]
  %v54 = vld [vmem:[%s1 + $0x158] sm:$0xff]
  %v55 = vld [vmem:[%s1 + $0x160] sm:$0xff]
  %v56 = vld [vmem:[%s1 + $0x168] sm:$0xff]
  %v57 = vld [vmem:[%s1 + $0x170] sm:$0xff]
  %v58 = vld [vmem:[%s1 + $0x178] sm:$0xff]
  %v59 = vld [vmem:[%s0] sm:$0xff]
  %v60 = vld [vmem:[%s0 + $0x8] sm:$0xff]
  %v61 = vld [vmem:[%s0 + $0x10] sm:$0xff]
  %v62 = vld [vmem:[%s0 + $0x18] sm:$0xff]
  %v63 = vld [vmem:[%s0 + $0x20] sm:$0xff]
  %v64 = vld [vmem:[%s0 + $0x28] sm:$0xff]
  %v65 = vld [vmem:[%s0 + $0x30] sm:$0xff]
  %v66 = vld [vmem:[%s0 + $0x38] sm:$0xff]
  %v67 = vld [vmem:[%s0 + $0x40] sm:$0xff]
  %v68 = vld [vmem:[%s0 + $0x48] sm:$0xff]
  %v69 = vld [vmem:[%s0 + $0x50] sm:$0xff]
  %v70 = vld [vmem:[%s0 + $0x58] sm:$0xff]
  %v71 = vld [vmem:[%s0 + $0x60] sm:$0xff]
  %v72 = vld [vmem:[%s0 + $0x68] sm:$0xff]
  %v73 = vld [vmem:[%s0 + $0x70] sm:$0xff]
  %v74 = vld [vmem:[%s0 + $0x78] sm:$0xff]
  %v75 = vld [vmem:[%s0 + $0x80] sm:$0xff]
  %v76 = vld [vmem:[%s0 + $0x88] sm:$0xff]
  %v77 = vld [vmem:[%s0 + $0x90] sm:$0xff]
  %v78 = vld [vmem:[%s0 + $0x98] sm:$0xff]
  %v79 = vld [vmem:[%s0 + $0xa0] sm:$0xff]
  %v80 = vld [vmem:[%s0 + $0xa8] sm:$0xff]
  %v81 = vld [vmem:[%s0 + $0xb0] sm:$0xff]
  %v82 = vld [vmem:[%s0 + $0xb8] sm:$0xff]
  %v83 = vld [vmem:[%s0 + $0xc0] sm:$0xff]
  %v84 = vld [vmem:[%s0 + $0xc8] sm:$0xff]
  %v85 = vld [vmem:[%s0 + $0xd0] sm:$0xff]
  %v86 = vld [vmem:[%s0 + $0xd8] sm:$0xff]
  %v87 = vld [vmem:[%s0 + $0xe0] sm:$0xff]
  %v88 = vld [vmem:[%s0 + $0xe8] sm:$0xff]
  %v89 = vld [vmem:[%s0 + $0xf0] sm:$0xff]
  %v90 = vld [vmem:[%s0 + $0xf8] sm:$0xff]
  %v91 = vld [vmem:[%s0 + $0x100] sm:$0xff]
  %v92 = vld [vmem:[%s0 + $0x108] sm:$0xff]
  %v93 = vld [vmem:[%s0 + $0x110] sm:$0xff]
  %v94 = vld [vmem:[%s0 + $0x118] sm:$0xff]
  %v95 = vld [vmem:[%s0 + $0x120] sm:$0xff]
  %v96 = vld [vmem:[%s0 + $0x128] sm:$0xff]
  %v97 = vld [vmem:[%s0 + $0x130] sm:$0xff]
  %v98 = vld [vmem:[%s0 + $0x138] sm:$0xff]
  %v99 = vld [vmem:[%s0 + $0x140] sm:$0xff]
  %v100 = vld [vmem:[%s0 + $0x148] sm:$0xff]
  %v101 = vld [vmem:[%s0 + $0x150] sm:$0xff]
  %v102 = vld [vmem:[%s0 + $0x158] sm:$0xff]
  %v103 = vld [vmem:[%s0 + $0x160] sm:$0xff]
  %v104 = vld [vmem:[%s0 + $0x168] sm:$0xff]
  %v105 = vld [vmem:[%s0 + $0x170] sm:$0xff]
  %v106 = vld [vmem:[%s0 + $0x178] sm:$0xff]
  %v107 = vadd.f32 %v11, %v59
  %v108 = vadd.f32 %v12, %v60
  %v109 = vadd.f32 %v13, %v61
  %v110 = vadd.f32 %v14, %v62
  %v111 = vadd.f32 %v15, %v63
  %v112 = vadd.f32 %v16, %v64
  %v113 = vadd.f32 %v17, %v65
  %v114 = vadd.f32 %v18, %v66
  %v115 = vadd.f32 %v19, %v67
  %v116 = vadd.f32 %v20, %v68
  %v117 = vadd.f32 %v21, %v69
  %v118 = vadd.f32 %v22, %v70
  %v119 = vadd.f32 %v23, %v71
  %v120 = vadd.f32 %v24, %v72
  %v121 = vadd.f32 %v25, %v73
  %v122 = vadd.f32 %v26, %v74
  %v123 = vadd.f32 %v27, %v75
  %v124 = vadd.f32 %v28, %v76
  %v125 = vadd.f32 %v29, %v77
  %v126 = vadd.f32 %v30, %v78
  %v127 = vadd.f32 %v31, %v79
  %v128 = vadd.f32 %v32, %v80
  %v129 = vadd.f32 %v33, %v81
  %v130 = vadd.f32 %v34, %v82
  %v131 = vadd.f32 %v35, %v83
  %v132 = vadd.f32 %v36, %v84
  %v133 = vadd.f32 %v37, %v85
  %v134 = vadd.f32 %v38, %v86
  %v135 = vadd.f32 %v39, %v87
  %v136 = vadd.f32 %v40, %v88
  %v137 = vadd.f32 %v41, %v89
  %v138 = vadd.f32 %v42, %v90
  %v139 = vadd.f32 %v43, %v91
  %v140 = vadd.f32 %v44, %v92
  %v141 = vadd.f32 %v45, %v93
  %v142 = vadd.f32 %v46, %v94
  %v143 = vadd.f32 %v47, %v95
  %v144 = vadd.f32 %v48, %v96
  %v145 = vadd.f32 %v49, %v97
  %v146 = vadd.f32 %v50, %v98
  %v147 = vadd.f32 %v51, %v99
  %v148 = vadd.f32 %v52, %v100
  %v149 = vadd.f32 %v53, %v101
  %v150 = vadd.f32 %v54, %v102
  %v151 = vadd.f32 %v55, %v103
  %v152 = vadd.f32 %v56, %v104
  %v153 = vadd.f32 %v57, %v105
  %v154 = vadd.f32 %v58, %v106
  %v155 = vmax.f32 %v107, 0.0
  %v156 = vmax.f32 %v108, 0.0
  %v157 = vmax.f32 %v109, 0.0
  %v158 = vmax.f32 %v110, 0.0
  %v159 = vmax.f32 %v111, 0.0
  %v160 = vmax.f32 %v112, 0.0
  %v161 = vmax.f32 %v113, 0.0
  %v162 = vmax.f32 %v114, 0.0
  %v163 = vmax.f32 %v115, 0.0
  %v164 = vmax.f32 %v116, 0.0
  %v165 = vmax.f32 %v117, 0.0
  %v166 = vmax.f32 %v118, 0.0
  %v167 = vmax.f32 %v119, 0.0
  %v168 = vmax.f32 %v120, 0.0
  %v169 = vmax.f32 %v121, 0.0
  %v170 = vmax.f32 %v122, 0.0
  %v171 = vmax.f32 %v123, 0.0
  %v172 = vmax.f32 %v124, 0.0
  %v173 = vmax.f32 %v125, 0.0
  %v174 = vmax.f32 %v126, 0.0
  %v175 = vmax.f32 %v127, 0.0
  %v176 = vmax.f32 %v128, 0.0
  %v177 = vmax.f32 %v129, 0.0
  %v178 = vmax.f32 %v130, 0.0
  %v179 = vmax.f32 %v131, 0.0
  %v180 = vmax.f32 %v132, 0.0
  %v181 = vmax.f32 %v133, 0.0
  %v182 = vmax.f32 %v134, 0.0
  %v183 = vmax.f32 %v135, 0.0
  %v184 = vmax.f32 %v136, 0.0
  %v185 = vmax.f32 %v137, 0.0
  %v186 = vmax.f32 %v138, 0.0
  %v187 = vmax.f32 %v139, 0.0
  %v188 = vmax.f32 %v140, 0.0
  %v189 = vmax.f32 %v141, 0.0
  %v190 = vmax.f32 %v142, 0.0
  %v191 = vmax.f32 %v143, 0.0
  %v192 = vmax.f32 %v144, 0.0
  %v193 = vmax.f32 %v145, 0.0
  %v194 = vmax.f32 %v146, 0.0
  %v195 = vmax.f32 %v147, 0.0
  %v196 = vmax.f32 %v148, 0.0
  %v197 = vmax.f32 %v149, 0.0
  %v198 = vmax.f32 %v150, 0.0
  %v199 = vmax.f32 %v151, 0.0
  %v200 = vmax.f32 %v152, 0.0
  %v201 = vmax.f32 %v153, 0.0
  %v202 = vmax.f32 %v154, 0.0
  %v203 = vmin.f32 %v155, 255.0
  %v204 = vmin.f32 %v156, 255.0
  %v205 = vmin.f32 %v157, 255.0
  %v206 = vmin.f32 %v158, 255.0
  %v207 = vmin.f32 %v159, 255.0
  %v208 = vmin.f32 %v160, 255.0
  %v209 = vmin.f32 %v161, 255.0
  %v210 = vmin.f32 %v162, 255.0
  %v211 = vmin.f32 %v163, 255.0
  %v212 = vmin.f32 %v164, 255.0
  %v213 = vmin.f32 %v165, 255.0
  %v214 = vmin.f32 %v166, 255.0
  %v215 = vmin.f32 %v167, 255.0
  %v216 = vmin.f32 %v168, 255.0
  %v217 = vmin.f32 %v169, 255.0
  %v218 = vmin.f32 %v170, 255.0
  %v219 = vmin.f32 %v171, 255.0
  %v220 = vmin.f32 %v172, 255.0
  %v221 = vmin.f32 %v173, 255.0
  %v222 = vmin.f32 %v174, 255.0
  %v223 = vmin.f32 %v175, 255.0
  %v224 = vmin.f32 %v176, 255.0
  %v225 = vmin.f32 %v177, 255.0
  %v226 = vmin.f32 %v178, 255.0
  %v227 = vmin.f32 %v179, 255.0
  %v228 = vmin.f32 %v180, 255.0
  %v229 = vmin.f32 %v181, 255.0
  %v230 = vmin.f32 %v182, 255.0
  %v231 = vmin.f32 %v183, 255.0
  %v232 = vmin.f32 %v184, 255.0
  %v233 = vmin.f32 %v185, 255.0
  %v234 = vmin.f32 %v186, 255.0
  %v235 = vmin.f32 %v187, 255.0
  %v236 = vmin.f32 %v188, 255.0
  %v237 = vmin.f32 %v189, 255.0
  %v238 = vmin.f32 %v190, 255.0
  %v239 = vmin.f32 %v191, 255.0
  %v240 = vmin.f32 %v192, 255.0
  %v241 = vmin.f32 %v193, 255.0
  %v242 = vmin.f32 %v194, 255.0
  %v243 = vmin.f32 %v195, 255.0
  %v244 = vmin.f32 %v196, 255.0
  %v245 = vmin.f32 %v197, 255.0
  %v246 = vmin.f32 %v198, 255.0
  %v247 = vmin.f32 %v199, 255.0
  %v248 = vmin.f32 %v200, 255.0
  %v249 = vmin.f32 %v201, 255.0
  %v250 = vmin.f32 %v202, 255.0
  %251 = vst [vmem:[%s2] sm:$0xff] %v203
  %252 = vst [vmem:[%s2 + $0x8] sm:$0xff] %v204
  %253 = vst [vmem:[%s2 + $0x10] sm:$0xff] %v205
  %254 = vst [vmem:[%s2 + $0x18] sm:$0xff] %v206
  %255 = vst [vmem:[%s2 + $0x20] sm:$0xff] %v207
  %256 = vst [vmem:[%s2 + $0x28] sm:$0xff] %v208
  %257 = vst [vmem:[%s2 + $0x30] sm:$0xff] %v209
  %258 = vst [vmem:[%s2 + $0x38] sm:$0xff] %v210
  %259 = vst [vmem:[%s2 + $0x40] sm:$0xff] %v211
  %260 = vst [vmem:[%s2 + $0x48] sm:$0xff] %v212
  %261 = vst [vmem:[%s2 + $0x50] sm:$0xff] %v213
  %262 = vst [vmem:[%s2 + $0x58] sm:$0xff] %v214
  %263 = vst [vmem:[%s2 + $0x60] sm:$0xff] %v215
  %264 = vst [vmem:[%s2 + $0x68] sm:$0xff] %v216
  %265 = vst [vmem:[%s2 + $0x70] sm:$0xff] %v217
  %266 = vst [vmem:[%s2 + $0x78] sm:$0xff] %v218
  %267 = vst [vmem:[%s2 + $0x80] sm:$0xff] %v219
  %268 = vst [vmem:[%s2 + $0x88] sm:$0xff] %v220
  %269 = vst [vmem:[%s2 + $0x90] sm:$0xff] %v221
  %270 = vst [vmem:[%s2 + $0x98] sm:$0xff] %v222
  %271 = vst [vmem:[%s2 + $0xa0] sm:$0xff] %v223
  %272 = vst [vmem:[%s2 + $0xa8] sm:$0xff] %v224
  %273 = vst [vmem:[%s2 + $0xb0] sm:$0xff] %v225
  %274 = vst [vmem:[%s2 + $0xb8] sm:$0xff] %v226
  %275 = vst [vmem:[%s2 + $0xc0] sm:$0xff] %v227
  %276 = vst [vmem:[%s2 + $0xc8] sm:$0xff] %v228
  %277 = vst [vmem:[%s2 + $0xd0] sm:$0xff] %v229
  %278 = vst [vmem:[%s2 + $0xd8] sm:$0xff] %v230
  %279 = vst [vmem:[%s2 + $0xe0] sm:$0xff] %v231
  %280 = vst [vmem:[%s2 + $0xe8] sm:$0xff] %v232
  %281 = vst [vmem:[%s2 + $0xf0] sm:$0xff] %v233
  %282 = vst [vmem:[%s2 + $0xf8] sm:$0xff] %v234
  %283 = vst [vmem:[%s2 + $0x100] sm:$0xff] %v235
  %284 = vst [vmem:[%s2 + $0x108] sm:$0xff] %v236
  %285 = vst [vmem:[%s2 + $0x110] sm:$0xff] %v237
  %286 = vst [vmem:[%s2 + $0x118] sm:$0xff] %v238
  %287 = vst [vmem:[%s2 + $0x120] sm:$0xff] %v239
  %288 = vst [vmem:[%s2 + $0x128] sm:$0xff] %v240
  %289 = vst [vmem:[%s2 + $0x130] sm:$0xff] %v241
  %290 = vst [vmem:[%s2 + $0x138] sm:$0xff] %v242
  %291 = vst [vmem:[%s2 + $0x140] sm:$0xff] %v243
  %292 = vst [vmem:[%s2 + $0x148] sm:$0xff] %v244
  %293 = vst [vmem:[%s2 + $0x150] sm:$0xff] %v245
  %294 = vst [vmem:[%s2 + $0x158] sm:$0xff] %v246
  %295 = vst [vmem:[%s2 + $0x160] sm:$0xff] %v247
  %296 = vst [vmem:[%s2 + $0x168] sm:$0xff] %v248
  %297 = vst [vmem:[%s2 + $0x170] sm:$0xff] %v249
  %298 = vst [vmem:[%s2 + $0x178] sm:$0xff] %v250
  // Predicated region
  $region10: #{_perturb_impl.1} parent=0 // pred_check
    _
  $region11: #{_perturb_impl.1} parent=0 // pred_check_branch
    %300 = sbr.rel (0) target = $region13
  $region12: #{_perturb_impl.1} parent=0 // pred_region
    _
  $region13: #{_perturb_impl.1} parent=0 // pred_fallthru
    _
  // Predicated region
  $region14: #{_perturb_impl.1} parent=0 // pred_check
    _
  $region15: #{_perturb_impl.1} parent=0 // pred_check_branch
    %302 = sbr.rel (0) target = $region17
  $region16: #{_perturb_impl.1} parent=0 // pred_region
    _
  $region17: #{_perturb_impl.1} parent=0 // pred_fallthru
    _

</llo_original>
